<compile_context>
chip_gen: v5e
topology: v5e:2x2
jax: 0.10.0
libtpu: 0.0.40
codegen_flags: <defaults>
</compile_context>

<pallas_src>
import functools

import jax
import jax.numpy as jnp
from jax.experimental import pallas as pl
from jax.experimental.pallas import tpu as pltpu

# CompilerParams was renamed from TPUCompilerParams in newer JAX; resolve whichever exists.
_CompilerParams = getattr(pltpu, "CompilerParams", None) or getattr(pltpu, "TPUCompilerParams")

_TM = 256                      # matmul row tile (fills the 256-wide MXU on v6e/v7x)
_VMEM_LIMIT = 32 * 1024 * 1024  # explicit scoped-VMEM budget (safe on v5e/v6e/v7x)


def _round_up(v, m):
    return ((v + m - 1) // m) * m


# -----------------------------------------------------------------------------
# Pallas kernels: matmul (+ bias, optional ReLU6, optional fused residual add)
# -----------------------------------------------------------------------------

def _mm_kernel(x_ref, w_ref, b_ref, o_ref, *, relu6):
    acc = jnp.dot(x_ref[...], w_ref[...], preferred_element_type=jnp.float32)
    y = acc + b_ref[...]
    if relu6:
        y = jnp.clip(y, 0.0, 6.0)
    o_ref[...] = y.astype(o_ref.dtype)


def _mm_res_kernel(x_ref, w_ref, b_ref, r_ref, o_ref, *, relu6):
    acc = jnp.dot(x_ref[...], w_ref[...], preferred_element_type=jnp.float32)
    y = acc + b_ref[...] + r_ref[...].astype(jnp.float32)
    if relu6:
        y = jnp.clip(y, 0.0, 6.0)
    o_ref[...] = y.astype(o_ref.dtype)


def matmul_bias_act(x, w, bias, *, relu6, residual=None, out_dtype=jnp.bfloat16):
    """x: (M, K), w: (K, N) bf16 (scale pre-folded), bias: (N,) f32 -> (M, N)."""
    M, K = x.shape
    K2, N = w.shape
    assert K == K2
    x = x.astype(jnp.bfloat16)
    w = w.astype(jnp.bfloat16)
    bias = bias.astype(jnp.float32).reshape(1, N)

    tm = min(_TM, _round_up(M, 8))          # partial last block handled by Pallas masking
    grid = (pl.cdiv(M, tm),)

    in_specs = [
        pl.BlockSpec((tm, K), lambda i: (i, 0)),
        pl.BlockSpec((K, N), lambda i: (0, 0)),   # weights resident across the M grid
        pl.BlockSpec((1, N), lambda i: (0, 0)),
    ]
    args = [x, w, bias]
    if residual is not None:
        in_specs.append(pl.BlockSpec((tm, N), lambda i: (i, 0)))
        args.append(residual.astype(jnp.bfloat16))
        kernel = functools.partial(_mm_res_kernel, relu6=relu6)
    else:
        kernel = functools.partial(_mm_kernel, relu6=relu6)

    return pl.pallas_call(
        kernel,
        out_shape=jax.ShapeDtypeStruct((M, N), out_dtype),
        grid=grid,
        in_specs=in_specs,
        out_specs=pl.BlockSpec((tm, N), lambda i: (i, 0)),
        compiler_params=_CompilerParams(
            dimension_semantics=("parallel",),
            vmem_limit_bytes=_VMEM_LIMIT),
    )(*args)


# -----------------------------------------------------------------------------
# Pallas kernel: 3x3 depthwise conv, row-tiled, fused BN bias + ReLU6,
# direct stride-2 accumulation (no dense-then-subsample).
# -----------------------------------------------------------------------------

def _dw3x3_kernel(x_ref, w_ref, b_ref, o_ref, *, stride, th):
    # x_ref: (1, Hp, Wp, C) padded input, resident across row tiles (bf16)
    # w_ref: (3, 3, C) f32 (BN scale folded), b_ref: (1, C) f32
    # o_ref: (1, th, Wo, C) bf16
    C = o_ref.shape[3]
    Wo = o_ref.shape[2]
    r = pl.program_id(1)
    row0 = r * th * stride
    w = w_ref[...]
    acc = jnp.zeros((th, Wo, C), jnp.float32)

    if stride == 1:
        # one dynamic (unstrided) row-window load, 9 static tap slices
        win = x_ref[0, pl.ds(row0, th + 2), :, :].astype(jnp.float32)
        for dy in range(3):
            for dx in range(3):
                acc = acc + win[dy:dy + th, dx:dx + Wo, :] * w[dy, dx, :]
    else:
        # stride 2: strided load along W, row parity handled by a leading-dim reshape
        for dx in range(3):
            col = x_ref[0, pl.ds(row0, 2 * th + 2), pl.ds(dx, Wo, stride=2), :]
            col = col.astype(jnp.float32)                    # (2*th+2, Wo, C)
            for dy in range(3):
                sel = col[dy:dy + 2 * th].reshape(th, 2, Wo, C)[:, 0]   # rows dy, dy+2, ...
                acc = acc + sel * w[dy, dx, :]

    y = jnp.clip(acc + b_ref[0, :], 0.0, 6.0)
    o_ref[0] = y.astype(o_ref.dtype)


def _row_tile(ho, max_tile=8):
    for d in range(min(ho, max_tile), 0, -1):
        if ho % d == 0:
            return d
    return 1


def _dw_call(x, p, *, stride):
    N, H, W, C = x.shape
    assert H % stride == 0 and W % stride == 0
    Ho, Wo = H // stride, W // stride
    xp = jnp.pad(x, ((0, 0), (1, 1), (1, 1), (0, 0)))
    Hp, Wp = H + 2, W + 2
    th = _row_tile(Ho)
    return pl.pallas_call(
        functools.partial(_dw3x3_kernel, stride=stride, th=th),
        out_shape=jax.ShapeDtypeStruct((N, Ho, Wo, C), jnp.bfloat16),
        grid=(N, Ho // th),
        in_specs=[
            # padded image: index constant across the row-tile axis -> DMA'd once, resident
            pl.BlockSpec((1, Hp, Wp, C), lambda n, r: (n, 0, 0, 0)),
            pl.BlockSpec((3, 3, C), lambda n, r: (0, 0, 0)),
            pl.BlockSpec((1, C), lambda n, r: (0, 0)),
        ],
        out_specs=pl.BlockSpec((1, th, Wo, C), lambda n, r: (n, r, 0, 0)),
        compiler_params=_CompilerParams(
            dimension_semantics=("parallel", "arbitrary"),
            vmem_limit_bytes=_VMEM_LIMIT),
    )(xp, p["w"], p["bias"].reshape(1, C))


_DW_STRIDE2_OK = None  # None = unverified, True/False after first stride-2 call


def depthwise3x3_bn_relu6(x, p, *, stride):
    """x: (N, H, W, C) bf16 NHWC, padding=1, stride in {1, 2}."""
    global _DW_STRIDE2_OK
    assert stride in (1, 2)
    if stride == 1:
        return _dw_call(x, p, stride=1)

    if _DW_STRIDE2_OK is not False:
        try:
            fast = _dw_call(x, p, stride=2)
            if _DW_STRIDE2_OK is None:
                # one-time self-check of the strided-load path against the dense path
                dense = _dw_call(x, p, stride=1)[:, ::2, ::2, :]
                _DW_STRIDE2_OK = bool(jnp.allclose(
                    fast.astype(jnp.float32), dense.astype(jnp.float32),
                    rtol=1e-2, atol=1e-2))
                if not _DW_STRIDE2_OK:
                    return dense
            return fast
        except Exception:
            # TODO(synk): backend rejected strided in-kernel loads; using dense fallback.
            _DW_STRIDE2_OK = False

    out = _dw_call(x, p, stride=1)
    return out[:, ::2, ::2, :]


# -----------------------------------------------------------------------------
# Glue: regular conv via im2col + Pallas matmul (stem + all 1x1 convs)
# -----------------------------------------------------------------------------

def conv_bn_act(x, p, *, ksize, stride, relu6, residual=None):
    N, H, W, C = x.shape
    if ksize == 1:
        assert stride == 1
        patches = x.reshape(N * H * W, C)
        Ho, Wo = H, W
    else:
        # TODO(synk): stem im2col still materializes 9x patches in XLA; move into the kernel.
        pad = (ksize - 1) // 2
        xp = jnp.pad(x, ((0, 0), (pad, pad), (pad, pad), (0, 0)))
        Ho = (H + 2 * pad - ksize) // stride + 1
        Wo = (W + 2 * pad - ksize) // stride + 1
        cols = [xp[:, dy:dy + stride * Ho:stride, dx:dx + stride * Wo:stride, :]
                for dy in range(ksize) for dx in range(ksize)]
        patches = jnp.concatenate(cols, axis=-1).reshape(N * Ho * Wo, ksize * ksize * C)

    res = None
    if residual is not None:
        res = residual.reshape(N * Ho * Wo, residual.shape[-1])

    cout = p["w"].shape[1]
    y = matmul_bias_act(patches, p["w"], p["bias"], relu6=relu6, residual=res)
    return y.reshape(N, Ho, Wo, cout)


# -----------------------------------------------------------------------------
# MobileNetV2 parameters (deterministic synthetic init, exact architecture shapes)
# -----------------------------------------------------------------------------

_INVERTED_RESIDUAL_SETTINGS = [
    # t, c, n, s
    (1, 16, 1, 1),
    (6, 24, 2, 2),
    (6, 32, 3, 2),
    (6, 64, 4, 2),
    (6, 96, 3, 1),
    (6, 160, 3, 2),
    (6, 320, 1, 1),
]


class _KeyGen:
    def __init__(self, seed):
        self._key = jax.random.PRNGKey(seed)

    def __call__(self):
        self._key, k = jax.random.split(self._key)
        return k


def _fold_bn(gamma, beta, mean, var, eps=1e-5):
    scale = gamma / jnp.sqrt(var + eps)
    bias = beta - mean * scale
    return scale, bias


def _make_bn(kg, c):
    gamma = jax.random.uniform(kg(), (c,), minval=0.5, maxval=1.5)
    beta = 0.1 * jax.random.normal(kg(), (c,))
    mean = 0.1 * jax.random.normal(kg(), (c,))
    var = jax.random.uniform(kg(), (c,), minval=0.5, maxval=1.5)
    return _fold_bn(gamma, beta, mean, var)


def _make_conv_bn(kg, cin, cout, ksize):
    fan_in = cin * ksize * ksize
    w = jax.random.normal(kg(), (ksize, ksize, cin, cout), jnp.float32) / jnp.sqrt(fan_in)
    scale, bias = _make_bn(kg, cout)
    # fold BN scale into the weight, store in bf16 for the MXU
    w = (w.reshape(ksize * ksize * cin, cout) * scale[None, :]).astype(jnp.bfloat16)
    return {"w": w, "bias": bias.astype(jnp.float32)}


def _make_dw_bn(kg, c):
    w = jax.random.normal(kg(), (3, 3, c), jnp.float32) / 3.0
    scale, bias = _make_bn(kg, c)
    return {"w": (w * scale[None, None, :]).astype(jnp.float32),
            "bias": bias.astype(jnp.float32)}


def build_params(embed_size, seed=42):
    kg = _KeyGen(seed)
    params = {"stem": _make_conv_bn(kg, 3, 32, 3)}
    blocks = []
    cin = 32
    for t, c, n, s in _INVERTED_RESIDUAL_SETTINGS:
        for i in range(n):
            stride = s if i == 0 else 1
            hidden = cin * t
            blk = {"t": t, "stride": stride, "cin": cin, "cout": c}
            if t != 1:
                blk["expand"] = _make_conv_bn(kg, cin, hidden, 1)
            blk["dw"] = _make_dw_bn(kg, hidden)
            blk["project"] = _make_conv_bn(kg, hidden, c, 1)
            blocks.append(blk)
            cin = c
    params["blocks"] = blocks
    params["head"] = _make_conv_bn(kg, cin, 1280, 1)
    params["fc"] = {
        "w": (jax.random.normal(kg(), (1280, embed_size), jnp.float32)
              / jnp.sqrt(1280.0)).astype(jnp.bfloat16),
        "b": (0.01 * jax.random.normal(kg(), (embed_size,))).astype(jnp.float32),
    }
    return params


# -----------------------------------------------------------------------------
# Forward pass (matches ImgEncoder.forward semantics, eval-mode inference)
# -----------------------------------------------------------------------------

def inverted_residual(x, blk):
    y = x
    if blk["t"] != 1:
        y = conv_bn_act(y, blk["expand"], ksize=1, stride=1, relu6=True)
    y = depthwise3x3_bn_relu6(y, blk["dw"], stride=blk["stride"])
    use_res = blk["stride"] == 1 and blk["cin"] == blk["cout"]
    # residual add fused into the project matmul epilogue
    y = conv_bn_act(y, blk["project"], ksize=1, stride=1, relu6=False,
                    residual=x if use_res else None)
    return y


def img_encoder_forward(image_nchw, params):
    # NCHW (PyTorch convention) -> NHWC (kernel layout), bf16 activations
    x = jnp.transpose(image_nchw, (0, 2, 3, 1)).astype(jnp.bfloat16)
    x = conv_bn_act(x, params["stem"], ksize=3, stride=2, relu6=True)       # features[0]
    for blk in params["blocks"]:                                            # features[1:18]
        x = inverted_residual(x, blk)
    x = conv_bn_act(x, params["head"], ksize=1, stride=1, relu6=True)       # features[18]
    # adaptive_avg_pool2d((1,1)) + flatten     TODO(synk): fuse pooling into the head kernel
    feat = jnp.mean(x.astype(jnp.float32), axis=(1, 2))
    # classifier == Sequential(Dropout(0.2)) after truncation -> identity in eval mode
    out = matmul_bias_act(feat, params["fc"]["w"], params["fc"]["b"],
                          relu6=False, out_dtype=jnp.float32)               # self.fc
    return out


# -----------------------------------------------------------------------------
# Demo
# -----------------------------------------------------------------------------

if __name__ == "__main__":
    embed_size = 32
    params = build_params(embed_size, seed=42)

    key = jax.random.PRNGKey(0)
    # Small RGB images, NCHW like the PyTorch module (spatial 32 -> final feature 1x1).
    image = jax.random.normal(key, (2, 3, 32, 32), jnp.float32)

    out = img_encoder_forward(image, params)
    out = jax.block_until_ready(out)
    assert out.shape == (2, embed_size), out.shape
    assert jnp.all(jnp.isfinite(out))
    print("KERNEL_OK")
</pallas_src>

<mosaic_0001>
module attributes {stable_mosaic.version = 11 : i64} {
  func.func @_mm_kernel(%arg0: i32, %arg1: memref<256x27xbf16, #tpu.memory_space<vmem>>, %arg2: memref<27x32xbf16, #tpu.memory_space<vmem>>, %arg3: memref<1x32xf32, #tpu.memory_space<vmem>>, %arg4: memref<256x32xbf16, #tpu.memory_space<vmem>>) attributes {dimension_semantics = [#tpu.dimension_semantics<parallel>], iteration_bounds = array<i64: 2>, scalar_prefetch = 0 : i64, scratch_operands = 0 : i64, tpu.core_type = #tpu.core_type<tc>, window_params = [{transform_indices = @transform_0, window_bounds = array<i64: 256, 27>}, {pipeline_mode = #tpu.pipeline_mode<synchronous>, transform_indices = @transform_1, window_bounds = array<i64: 27, 32>}, {pipeline_mode = #tpu.pipeline_mode<synchronous>, transform_indices = @transform_2, window_bounds = array<i64: 1, 32>}, {transform_indices = @transform_3, window_bounds = array<i64: 256, 32>}]} {
    %c0 = arith.constant 0 : index
    %c0_0 = arith.constant 0 : index
    %0 = vector.load %arg1[%c0, %c0_0] : memref<256x27xbf16, #tpu.memory_space<vmem>>, vector<256x27xbf16>
    %c0_1 = arith.constant 0 : index
    %c0_2 = arith.constant 0 : index
    %1 = vector.load %arg2[%c0_1, %c0_2] : memref<27x32xbf16, #tpu.memory_space<vmem>>, vector<27x32xbf16>
    %cst = arith.constant dense<0.000000e+00> : vector<256x32xf32>
    %2 = tpu.matmul %0, %1, %cst {dimension_numbers = #tpu.dot_dimension_numbers<[1], [0], [0], [1], [0, 0, 1, 1], [], []>} : vector<256x27xbf16>, vector<27x32xbf16>, vector<256x32xf32> -> vector<256x32xf32>
    %c0_3 = arith.constant 0 : index
    %c0_4 = arith.constant 0 : index
    %3 = vector.load %arg3[%c0_3, %c0_4] : memref<1x32xf32, #tpu.memory_space<vmem>>, vector<1x32xf32>
    %4 = vector.broadcast %3 : vector<1x32xf32> to vector<256x32xf32>
    %5 = arith.addf %2, %4 : vector<256x32xf32>
    %cst_5 = arith.constant 0.000000e+00 : f32
    %cst_6 = arith.constant 6.000000e+00 : f32
    %6 = vector.broadcast %cst_5 : f32 to vector<256x32xf32>
    %7 = arith.maximumf %6, %5 : vector<256x32xf32>
    %8 = vector.broadcast %cst_6 : f32 to vector<256x32xf32>
    %9 = arith.minimumf %8, %7 : vector<256x32xf32>
    %10 = arith.truncf %9 : vector<256x32xf32> to vector<256x32xbf16>
    %c0_7 = arith.constant 0 : index
    %c0_8 = arith.constant 0 : index
    %11 = vector.load %arg4[%c0_7, %c0_8] : memref<256x32xbf16, #tpu.memory_space<vmem>>, vector<256x32xbf16>
    tpu.vector_store %arg4[%c0_7, %c0_8], %10 {strides = array<i32>} : memref<256x32xbf16, #tpu.memory_space<vmem>>, vector<256x32xbf16>,
    return
  }
  func.func @transform_0(%arg0: i32) -> (i32, i32) {
    %c0_i32 = arith.constant 0 : i32
    %c0_i32_0 = arith.constant 0 : i32
    return %arg0, %c0_i32 : i32, i32
  }
  func.func @transform_1(%arg0: i32) -> (i32, i32) {
    %c0_i32 = arith.constant 0 : i32
    %c0_i32_0 = arith.constant 0 : i32
    %c0_i32_1 = arith.constant 0 : i32
    return %c0_i32, %c0_i32_0 : i32, i32
  }
  func.func @transform_2(%arg0: i32) -> (i32, i32) {
    %c0_i32 = arith.constant 0 : i32
    %c0_i32_0 = arith.constant 0 : i32
    %c0_i32_1 = arith.constant 0 : i32
    return %c0_i32, %c0_i32_0 : i32, i32
  }
  func.func @transform_3(%arg0: i32) -> (i32, i32) {
    %c0_i32 = arith.constant 0 : i32
    %c0_i32_0 = arith.constant 0 : i32
    return %arg0, %c0_i32 : i32, i32
  }
}

</mosaic_0001>

<llo_original>
// kernel: tpu_custom_call.1
$region0: #{tpu_custom_call.1}
  #allocation0 [shape = 'u32[]', space=smem, size = 0x4, offset = 0x4, fixed_abs, tag = 'smem constant byte address 0x4 - core index']
  #allocation1 [shape = 'u32[72,128]{1,0:T(1,128)}', space=vmem, size = 0x9000, scoped, tag = 'internal scratch']
  %s0 = inlined_call_operand.vmem [shape: bf16[512,27], index: 0, kind: input, shape index: {}]
  %s1 = inlined_call_operand.vmem [shape: bf16[27,32], index: 1, kind: input, shape index: {}]
  %s2 = inlined_call_operand.vmem [shape: f32[1,32], index: 2, kind: input, shape index: {}]
  %s3 = inlined_call_operand.vmem [shape: bf16[512,32], index: 3, kind: output, shape index: {}]
  %s4 = sld [smem:[#allocation0]]
  $region45: #{tpu_custom_call.1} parent=0
    _
  %s6 = ssub.s32 1, %s4
  %s7 = scalar_select 0, %s6, %s4
  loop: start=0, step=1, limit=4
  $region2: #{tpu_custom_call.1} parent=0 // loop_pre_header
    _
  $region3: #{tpu_custom_call.1} parent=0 // loop_header
    %s9 = sphi 0, %s13
    %p10 = scmp.ge.s32.totalorder %s9, 4
    %s19 = sphi 0, %s21
    %s22 = sphi 0, %s19
    %s23 = sphi 0, %s22
    %s39 = sphi 0, %s23
    %s43 = sphi 0, %s43
    %s45 = sphi 0, %s43
    %s46 = sphi 0, %s45
    %s60 = sphi 0, %s46
    %s64 = sphi 0, %s64
    %s66 = sphi 0, %s64
    %s67 = sphi 0, %s66
    %s81 = sphi 0, %s67
    %s87 = sphi 0, %s89
    %s90 = sphi 0, %s87
    %s91 = sphi 0, %s90
    %s107 = sphi 0, %s91
  $region4: #{tpu_custom_call.1} parent=0 // loop_header_branch
    %12 = sbr.rel (%p10) target = $region8
  $region5: #{tpu_custom_call.1} parent=0 // loop_body
    %s14 = ssub.s32 %s9, 1
    %s15 = ssub.s32 %s9, 2
    %s16 = sadd.s32 %s9, 1
    %s17 = ssub.s32 %s9, %s16
    %p18 = scmp.eq.s32.totalorder %s17, 0
    %s20 = sadd.s32 %s19, 1
    %s21 = scalar_select %p18, %s19, %s20
    %p24 = pneg %p18
    %p25 = scmp.eq.s32.totalorder %s9, 1
    %p26 = por %p24, %p25
    %p27 = scmp.ne.s32.totalorder %s19, %s22
    %p28 = scmp.eq.s32.totalorder %s9, 0
    %p29 = por %p27, %p28
    %p30 = scmp.ne.s32.totalorder %s19, %s22
    %p31 = scmp.eq.s32.totalorder %s14, 1
    %p32 = por %p30, %p31
    %p33 = scmp.ne.s32.totalorder %s22, %s23
    %p34 = scmp.eq.s32.totalorder %s14, 0
    %p35 = por %p33, %p34
    %p36 = scmp.ne.s32.totalorder %s22, %s23
    %p37 = scmp.eq.s32.totalorder %s15, 1
    %p38 = por %p36, %p37
    %p40 = scmp.ne.s32.totalorder %s23, %s39
    %p41 = scmp.eq.s32.totalorder %s15, 0
    %p42 = por %p40, %p41
    %s44 = sadd.s32 %s43, 1
    %p47 = scmp.eq.s32.totalorder %s9, 1
    %p48 = scmp.ne.s32.totalorder %s43, %s45
    %p49 = scmp.eq.s32.totalorder %s9, 0
    %p50 = por %p48, %p49
    %p51 = scmp.ne.s32.totalorder %s43, %s45
    %p52 = scmp.eq.s32.totalorder %s14, 1
    %p53 = por %p51, %p52
    %p54 = scmp.ne.s32.totalorder %s45, %s46
    %p55 = scmp.eq.s32.totalorder %s14, 0
    %p56 = por %p54, %p55
    %p57 = scmp.ne.s32.totalorder %s45, %s46
    %p58 = scmp.eq.s32.totalorder %s15, 1
    %p59 = por %p57, %p58
    %p61 = scmp.ne.s32.totalorder %s46, %s60
    %p62 = scmp.eq.s32.totalorder %s15, 0
    %p63 = por %p61, %p62
    %s65 = sadd.s32 %s64, 1
    %p68 = scmp.eq.s32.totalorder %s9, 1
    %p69 = scmp.ne.s32.totalorder %s64, %s66
    %p70 = scmp.eq.s32.totalorder %s9, 0
    %p71 = por %p69, %p70
    %p72 = scmp.ne.s32.totalorder %s64, %s66
    %p73 = scmp.eq.s32.totalorder %s14, 1
    %p74 = por %p72, %p73
    %p75 = scmp.ne.s32.totalorder %s66, %s67
    %p76 = scmp.eq.s32.totalorder %s14, 0
    %p77 = por %p75, %p76
    %p78 = scmp.ne.s32.totalorder %s66, %s67
    %p79 = scmp.eq.s32.totalorder %s15, 1
    %p80 = por %p78, %p79
    %p82 = scmp.ne.s32.totalorder %s67, %s81
    %p83 = scmp.eq.s32.totalorder %s15, 0
    %p84 = por %p82, %p83
    %s85 = ssub.s32 %s9, %s16
    %p86 = scmp.eq.s32.totalorder %s85, 0
    %s88 = sadd.s32 %s87, 1
    %s89 = scalar_select %p86, %s87, %s88
    %p92 = pneg %p86
    %p93 = scmp.eq.s32.totalorder %s9, 1
    %p94 = por %p92, %p93
    %p95 = scmp.ne.s32.totalorder %s87, %s90
    %p96 = scmp.eq.s32.totalorder %s9, 0
    %p97 = por %p95, %p96
    %p98 = scmp.ne.s32.totalorder %s87, %s90
    %p99 = scmp.eq.s32.totalorder %s14, 1
    %p100 = por %p98, %p99
    %p101 = scmp.ne.s32.totalorder %s90, %s91
    %p102 = scmp.eq.s32.totalorder %s14, 0
    %p103 = por %p101, %p102
    %p104 = scmp.ne.s32.totalorder %s90, %s91
    %p105 = scmp.eq.s32.totalorder %s15, 1
    %p106 = por %p104, %p105
    %p108 = scmp.ne.s32.totalorder %s91, %s107
    %p109 = scmp.eq.s32.totalorder %s15, 0
    %p110 = por %p108, %p109
    %p111 = scmp.le.s32.totalorder 1, %s9
    %p112 = scmp.lt.s32.totalorder %s9, 3
    %p113 = pnand %p111, %p112
    %p114 = pneg %p113
    // Predicated region
    $region9: #{tpu_custom_call.1} parent=5 // pred_check
      _
    $region10: #{tpu_custom_call.1} parent=5 // pred_check_branch
      %116 = sbr.rel (%p113) target = $region12
    $region11: #{tpu_custom_call.1} parent=5 // pred_region
      %s117 = ssub.s32 %s9, 1
      // Predicated region
      $region13: #{tpu_custom_call.1} parent=11 // pred_check
        %p118 = pneg %p56
      $region14: #{tpu_custom_call.1} parent=11 // pred_check_branch
        %120 = sbr.rel (%p118) target = $region16
      $region15: #{tpu_custom_call.1} parent=11 // pred_region
        _
      $region16: #{tpu_custom_call.1} parent=11 // pred_fallthru
        _
      // Predicated region
      $region17: #{tpu_custom_call.1} parent=11 // pred_check
        %p121 = pneg %p77
      $region18: #{tpu_custom_call.1} parent=11 // pred_check_branch
        %123 = sbr.rel (%p121) target = $region20
      $region19: #{tpu_custom_call.1} parent=11 // pred_region
        _
      $region20: #{tpu_custom_call.1} parent=11 // pred_fallthru
        _
    $region12: #{tpu_custom_call.1} parent=5 // pred_fallthru
      _
    %p124 = scmp.lt.s32.totalorder %s9, 2
    // Predicated region
    $region21: #{tpu_custom_call.1} parent=5 // pred_check
      %p125 = pneg %p124
    $region22: #{tpu_custom_call.1} parent=5 // pred_check_branch
      %127 = sbr.rel (%p125) target = $region24
    $region23: #{tpu_custom_call.1} parent=5 // pred_region
      // Predicated region
      $region25: #{tpu_custom_call.1} parent=23 // pred_check
        %p128 = pneg %p29
      $region26: #{tpu_custom_call.1} parent=23 // pred_check_branch
        %130 = sbr.rel (%p128) target = $region28
      $region27: #{tpu_custom_call.1} parent=23 // pred_region
        %s131 = smul.u32 32, %s9
        %p132 = scmp.lt.s32.totalorder %s131, 63
        %s133 = scalar_select %p132, %s131, 63
        %s134 = smul.addr %s133, 4
        %s135 = scalar_lea.vmem %s0, %s134
        %s136 = smul.u32 32, %s9
      $region28: #{tpu_custom_call.1} parent=23 // pred_fallthru
        _
    $region24: #{tpu_custom_call.1} parent=5 // pred_fallthru
      _
    %p137 = scmp.le.s32.totalorder 1, %s9
    %p138 = scmp.lt.s32.totalorder %s9, 3
    %p139 = pnand %p137, %p138
    %p140 = pneg %p139
    // Predicated region
    $region29: #{tpu_custom_call.1} parent=5 // pred_check
      _
    $region30: #{tpu_custom_call.1} parent=5 // pred_check_branch
      %142 = sbr.rel (%p139) target = $region32
    $region31: #{tpu_custom_call.1} parent=5 // pred_region
      %s143 = ssub.s32 %s9, 1
      %s144 = smul.u32 32, %s14
      %p145 = scmp.lt.s32.totalorder %s144, 63
      %s146 = scalar_select %p145, %s144, 63
      %s147 = smul.addr %s146, 4
      %s148 = scalar_lea.vmem %s0, %s147
      %p149 = pneg %p35
      %p150 = pneg %p32
      %p151 = pneg %p56
      %p152 = pneg %p53
      %p153 = pneg %p77
      %p154 = pneg %p74
      %p155 = pneg %p103
      %p156 = pneg %p100
      %s157 = smul.u32 32, %s14
      %p158 = scmp.lt.s32.totalorder %s157, 63
      %s159 = scalar_select %p158, %s157, 63
      %s160 = smul.addr %s159, 4
      %s161 = scalar_lea.vmem %s3, %s160
      %s162 = smul.u32 32, %s14
      %p163 = scmp.lt.s32.totalorder %s162, 63
      %s164 = scalar_select %p163, %s162, 63
      %s165 = smul.addr %s164, 4
      %s166 = scalar_lea.vmem %s0, %s165
      %s167 = smul.u32 32, %s14
      %s168 = smul.u32 32, %s14
      %p169 = scmp.lt.s32.totalorder %s168, 63
      %s170 = scalar_select %p169, %s168, 63
      %s171 = smul.addr %s170, 4
      %s172 = scalar_lea.vmem %s3, %s171
      %s173 = smul.u32 32, %s14
      %v175 = vld [vmem:[%s166] sm:$0xf]
      %v176 = vld [vmem:[%s166 + $0x4] sm:$0xf]
      %v177 = vld [vmem:[%s166 + $0x8] sm:$0xf]
      %v178 = vld [vmem:[%s166 + $0xc] sm:$0xf]
      %v179 = vld [vmem:[%s166 + $0x10] sm:$0xf]
      %v180 = vld [vmem:[%s166 + $0x14] sm:$0xf]
      %v181 = vld [vmem:[%s166 + $0x18] sm:$0xf]
      %v182 = vld [vmem:[%s166 + $0x1c] sm:$0xf]
      %v183 = vld [vmem:[%s166 + $0x20] sm:$0xf]
      %v184 = vld [vmem:[%s166 + $0x24] sm:$0xf]
      %v185 = vld [vmem:[%s166 + $0x28] sm:$0xf]
      %v186 = vld [vmem:[%s166 + $0x2c] sm:$0xf]
      %v187 = vld [vmem:[%s166 + $0x30] sm:$0xf]
      %v188 = vld [vmem:[%s166 + $0x34] sm:$0xf]
      %v189 = vld [vmem:[%s166 + $0x38] sm:$0xf]
      %v190 = vld [vmem:[%s166 + $0x3c] sm:$0xf]
      %v191 = vld [vmem:[%s166 + $0x40] sm:$0xf]
      %v192 = vld [vmem:[%s166 + $0x44] sm:$0xf]
      %v193 = vld [vmem:[%s166 + $0x48] sm:$0xf]
      %v194 = vld [vmem:[%s166 + $0x4c] sm:$0xf]
      %v195 = vld [vmem:[%s166 + $0x50] sm:$0xf]
      %v196 = vld [vmem:[%s166 + $0x54] sm:$0xf]
      %v197 = vld [vmem:[%s166 + $0x58] sm:$0xf]
      %v198 = vld [vmem:[%s166 + $0x5c] sm:$0xf]
      %v199 = vld [vmem:[%s166 + $0x60] sm:$0xf]
      %v200 = vld [vmem:[%s166 + $0x64] sm:$0xf]
      %v201 = vld [vmem:[%s166 + $0x68] sm:$0xf]
      %v202 = vld [vmem:[%s166 + $0x6c] sm:$0xf]
      %v203 = vld [vmem:[%s166 + $0x70] sm:$0xf]
      %v204 = vld [vmem:[%s166 + $0x74] sm:$0xf]
      %v205 = vld [vmem:[%s166 + $0x78] sm:$0xf]
      %v206 = vld [vmem:[%s166 + $0x7c] sm:$0xf]
      %v207 = vld [vmem:[%s1] sm:$0xf]
      %v208 = vld [vmem:[%s1 + $0x4] sm:$0xf]
      %v209 = vld [vmem:[%s1 + $0x8] sm:$0xf]
      %v210 = vld [vmem:[%s1 + $0xc] sm:$0x3]
      %v211 = vld [vmem:[%s2] sm:$0x1]
      %v213 = vperm.slane %v211, 0
      %v247 = vunpack.c.l.b16 %v175
      %v248 = vunpack.c.l.b16 %v176
      %v249 = vunpack.c.l.b16 %v177
      %v250 = vunpack.c.l.b16 %v178
      %v251 = vunpack.c.l.b16 %v179
      %v252 = vunpack.c.l.b16 %v180
      %v253 = vunpack.c.l.b16 %v181
      %v254 = vunpack.c.l.b16 %v182
      %v255 = vunpack.c.l.b16 %v183
      %v256 = vunpack.c.l.b16 %v184
      %v257 = vunpack.c.l.b16 %v185
      %v258 = vunpack.c.l.b16 %v186
      %v259 = vunpack.c.l.b16 %v187
      %v260 = vunpack.c.l.b16 %v188
      %v261 = vunpack.c.l.b16 %v189
      %v262 = vunpack.c.l.b16 %v190
      %v263 = vunpack.c.l.b16 %v191
      %v264 = vunpack.c.l.b16 %v192
      %v265 = vunpack.c.l.b16 %v193
      %v266 = vunpack.c.l.b16 %v194
      %v267 = vunpack.c.l.b16 %v195
      %v268 = vunpack.c.l.b16 %v196
      %v269 = vunpack.c.l.b16 %v197
      %v270 = vunpack.c.l.b16 %v198
      %v271 = vunpack.c.l.b16 %v199
      %v272 = vunpack.c.l.b16 %v200
      %v273 = vunpack.c.l.b16 %v201
      %v274 = vunpack.c.l.b16 %v202
      %v275 = vunpack.c.l.b16 %v203
      %v276 = vunpack.c.l.b16 %v204
      %v277 = vunpack.c.l.b16 %v205
      %v278 = vunpack.c.l.b16 %v206
      %v279 = vpack.c.b16 %v248, %v247
      %v280 = vpack.c.b16 %v250, %v249
      %v281 = vpack.c.b16 %v252, %v251
      %v282 = vpack.c.b16 %v254, %v253
      %v283 = vpack.c.b16 %v256, %v255
      %v284 = vpack.c.b16 %v258, %v257
      %v285 = vpack.c.b16 %v260, %v259
      %v286 = vpack.c.b16 %v262, %v261
      %v287 = vpack.c.b16 %v264, %v263
      %v288 = vpack.c.b16 %v266, %v265
      %v289 = vpack.c.b16 %v268, %v267
      %v290 = vpack.c.b16 %v270, %v269
      %v291 = vpack.c.b16 %v272, %v271
      %v292 = vpack.c.b16 %v274, %v273
      %v293 = vpack.c.b16 %v276, %v275
      %v294 = vpack.c.b16 %v278, %v277
      %v299 = vunpack.c.l.b16 %v207
      %v300 = vunpack.c.l.b16 %v208
      %v301 = vunpack.c.l.b16 %v209
      %v302 = vunpack.c.l.b16 %v210
      %v303 = vpack.c.b16 %v300, %v299
      %v304 = vpack.c.b16 %v302, %v301
      %vm306 = vcmask 220160
      %v308 = vsel %vm306, %v279, 0
      %v311 = vsel %vm306, %v280, 0
      %v314 = vsel %vm306, %v281, 0
      %v317 = vsel %vm306, %v282, 0
      %v320 = vsel %vm306, %v283, 0
      %v323 = vsel %vm306, %v284, 0
      %v326 = vsel %vm306, %v285, 0
      %v329 = vsel %vm306, %v286, 0
      %v332 = vsel %vm306, %v287, 0
      %v335 = vsel %vm306, %v288, 0
      %v338 = vsel %vm306, %v289, 0
      %v341 = vsel %vm306, %v290, 0
      %v344 = vsel %vm306, %v291, 0
      %v347 = vsel %vm306, %v292, 0
      %v350 = vsel %vm306, %v293, 0
      %v353 = vsel %vm306, %v294, 0
      %vm355 = vcmask 1044480
      %vm356 = vcmask 1045504
      %v357 = vsel %vm355, 4294967295, 65535
      %v358 = vsel %vm356, %v357, 0
      %v360 = vand.u32 %v304, %v358
      %362 = vmatpush.bf16.msra.mxu0 0
      %363 = vmatpush.bf16.msra.mxu0 0
      %364 = vmatpush.bf16.msra.mxu0 0
      %365 = vmatpush.bf16.msra.mxu0 0
      %366 = vmatpush.bf16.msra.mxu0 0
      %367 = vmatpush.bf16.msra.mxu0 0
      %368 = vmatpush.bf16.msra.mxu0 %v360
      %369 = vmatpush.bf16.msra.mxu0 %v303
      %370 = vmatmul.bf16.gmra.mxu0 %v308
      %v371 = vpop.f32.mrf.mxu0
      %v372 = vadd.f32 %v213, %v371
      %v373 = vpop.f32.mrf.mxu0
      %v374 = vadd.f32 %v213, %v373
      %375 = vmatmul.bf16.gmra.mxu0 %v311
      %v376 = vpop.f32.mrf.mxu0
      %v377 = vadd.f32 %v213, %v376
      %v378 = vpop.f32.mrf.mxu0
      %v379 = vadd.f32 %v213, %v378
      %380 = vmatmul.bf16.gmra.mxu0 %v314
      %v381 = vpop.f32.mrf.mxu0
      %v382 = vadd.f32 %v213, %v381
      %v383 = vpop.f32.mrf.mxu0
      %v384 = vadd.f32 %v213, %v383
      %385 = vmatmul.bf16.gmra.mxu0 %v317
      %v386 = vpop.f32.mrf.mxu0
      %v387 = vadd.f32 %v213, %v386
      %v388 = vpop.f32.mrf.mxu0
      %v389 = vadd.f32 %v213, %v388
      %390 = vmatmul.bf16.gmra.mxu0 %v320
      %v391 = vpop.f32.mrf.mxu0
      %v392 = vadd.f32 %v213, %v391
      %v393 = vpop.f32.mrf.mxu0
      %v394 = vadd.f32 %v213, %v393
      %395 = vmatmul.bf16.gmra.mxu0 %v323
      %v396 = vpop.f32.mrf.mxu0
      %v397 = vadd.f32 %v213, %v396
      %v398 = vpop.f32.mrf.mxu0
      %v399 = vadd.f32 %v213, %v398
      %400 = vmatmul.bf16.gmra.mxu0 %v326
      %v401 = vpop.f32.mrf.mxu0
      %v402 = vadd.f32 %v213, %v401
      %v403 = vpop.f32.mrf.mxu0
      %v404 = vadd.f32 %v213, %v403
      %405 = vmatmul.bf16.gmra.mxu0 %v329
      %v406 = vpop.f32.mrf.mxu0
      %v407 = vadd.f32 %v213, %v406
      %v408 = vpop.f32.mrf.mxu0
      %v409 = vadd.f32 %v213, %v408
      %410 = vmatmul.bf16.gmra.mxu0 %v332
      %v411 = vpop.f32.mrf.mxu0
      %v412 = vadd.f32 %v213, %v411
      %v413 = vpop.f32.mrf.mxu0
      %v414 = vadd.f32 %v213, %v413
      %415 = vmatmul.bf16.gmra.mxu0 %v335
      %v416 = vpop.f32.mrf.mxu0
      %v417 = vadd.f32 %v213, %v416
      %v418 = vpop.f32.mrf.mxu0
      %v419 = vadd.f32 %v213, %v418
      %420 = vmatmul.bf16.gmra.mxu0 %v338
      %v421 = vpop.f32.mrf.mxu0
      %v422 = vadd.f32 %v213, %v421
      %v423 = vpop.f32.mrf.mxu0
      %v424 = vadd.f32 %v213, %v423
      %425 = vmatmul.bf16.gmra.mxu0 %v341
      %v426 = vpop.f32.mrf.mxu0
      %v427 = vadd.f32 %v213, %v426
      %v428 = vpop.f32.mrf.mxu0
      %v429 = vadd.f32 %v213, %v428
      %430 = vmatmul.bf16.gmra.mxu0 %v344
      %v431 = vpop.f32.mrf.mxu0
      %v432 = vadd.f32 %v213, %v431
      %v433 = vpop.f32.mrf.mxu0
      %v434 = vadd.f32 %v213, %v433
      %435 = vmatmul.bf16.gmra.mxu0 %v347
      %v436 = vpop.f32.mrf.mxu0
      %v437 = vadd.f32 %v213, %v436
      %v438 = vpop.f32.mrf.mxu0
      %v439 = vadd.f32 %v213, %v438
      %440 = vmatmul.bf16.gmra.mxu0 %v350
      %v441 = vpop.f32.mrf.mxu0
      %v442 = vadd.f32 %v213, %v441
      %v443 = vpop.f32.mrf.mxu0
      %v444 = vadd.f32 %v213, %v443
      %445 = vmatmul.bf16.gmra.mxu0 %v353
      %v446 = vpop.f32.mrf.mxu0
      %v447 = vadd.f32 %v213, %v446
      %v448 = vpop.f32.mrf.mxu0
      %v449 = vadd.f32 %v213, %v448
      %450 = vdwg.mxu0
      %v451 = vmax.f32 %v372, 0.0
      %v452 = vmax.f32 %v374, 0.0
      %v453 = vmax.f32 %v377, 0.0
      %v454 = vmax.f32 %v379, 0.0
      %v455 = vmax.f32 %v382, 0.0
      %v456 = vmax.f32 %v384, 0.0
      %v457 = vmax.f32 %v387, 0.0
      %v458 = vmax.f32 %v389, 0.0
      %v459 = vmax.f32 %v392, 0.0
      %v460 = vmax.f32 %v394, 0.0
      %v461 = vmax.f32 %v397, 0.0
      %v462 = vmax.f32 %v399, 0.0
      %v463 = vmax.f32 %v402, 0.0
      %v464 = vmax.f32 %v404, 0.0
      %v465 = vmax.f32 %v407, 0.0
      %v466 = vmax.f32 %v409, 0.0
      %v467 = vmax.f32 %v412, 0.0
      %v468 = vmax.f32 %v414, 0.0
      %v469 = vmax.f32 %v417, 0.0
      %v470 = vmax.f32 %v419, 0.0
      %v471 = vmax.f32 %v422, 0.0
      %v472 = vmax.f32 %v424, 0.0
      %v473 = vmax.f32 %v427, 0.0
      %v474 = vmax.f32 %v429, 0.0
      %v475 = vmax.f32 %v432, 0.0
      %v476 = vmax.f32 %v434, 0.0
      %v477 = vmax.f32 %v437, 0.0
      %v478 = vmax.f32 %v439, 0.0
      %v479 = vmax.f32 %v442, 0.0
      %v480 = vmax.f32 %v444, 0.0
      %v481 = vmax.f32 %v447, 0.0
      %v482 = vmax.f32 %v449, 0.0
      %v483 = vmin.f32 %v451, 6.0
      %v484 = vmin.f32 %v452, 6.0
      %v485 = vmin.f32 %v453, 6.0
      %v486 = vmin.f32 %v454, 6.0
      %v487 = vmin.f32 %v455, 6.0
      %v488 = vmin.f32 %v456, 6.0
      %v489 = vmin.f32 %v457, 6.0
      %v490 = vmin.f32 %v458, 6.0
      %v491 = vmin.f32 %v459, 6.0
      %v492 = vmin.f32 %v460, 6.0
      %v493 = vmin.f32 %v461, 6.0
      %v494 = vmin.f32 %v462, 6.0
      %v495 = vmin.f32 %v463, 6.0
      %v496 = vmin.f32 %v464, 6.0
      %v497 = vmin.f32 %v465, 6.0
      %v498 = vmin.f32 %v466, 6.0
      %v499 = vmin.f32 %v467, 6.0
      %v500 = vmin.f32 %v468, 6.0
      %v501 = vmin.f32 %v469, 6.0
      %v502 = vmin.f32 %v470, 6.0
      %v503 = vmin.f32 %v471, 6.0
      %v504 = vmin.f32 %v472, 6.0
      %v505 = vmin.f32 %v473, 6.0
      %v506 = vmin.f32 %v474, 6.0
      %v507 = vmin.f32 %v475, 6.0
      %v508 = vmin.f32 %v476, 6.0
      %v509 = vmin.f32 %v477, 6.0
      %v510 = vmin.f32 %v478, 6.0
      %v511 = vmin.f32 %v479, 6.0
      %v512 = vmin.f32 %v480, 6.0
      %v513 = vmin.f32 %v481, 6.0
      %v514 = vmin.f32 %v482, 6.0
      %v515 = vpack.c.bf16 %v483, %v483
      %v516 = vpack.c.bf16 %v484, %v484
      %v517 = vpack.c.bf16 %v485, %v485
      %v518 = vpack.c.bf16 %v486, %v486
      %v519 = vpack.c.bf16 %v487, %v487
      %v520 = vpack.c.bf16 %v488, %v488
      %v521 = vpack.c.bf16 %v489, %v489
      %v522 = vpack.c.bf16 %v490, %v490
      %v523 = vpack.c.bf16 %v491, %v491
      %v524 = vpack.c.bf16 %v492, %v492
      %v525 = vpack.c.bf16 %v493, %v493
      %v526 = vpack.c.bf16 %v494, %v494
      %v527 = vpack.c.bf16 %v495, %v495
      %v528 = vpack.c.bf16 %v496, %v496
      %v529 = vpack.c.bf16 %v497, %v497
      %v530 = vpack.c.bf16 %v498, %v498
      %v531 = vpack.c.bf16 %v499, %v499
      %v532 = vpack.c.bf16 %v500, %v500
      %v533 = vpack.c.bf16 %v501, %v501
      %v534 = vpack.c.bf16 %v502, %v502
      %v535 = vpack.c.bf16 %v503, %v503
      %v536 = vpack.c.bf16 %v504, %v504
      %v537 = vpack.c.bf16 %v505, %v505
      %v538 = vpack.c.bf16 %v506, %v506
      %v539 = vpack.c.bf16 %v507, %v507
      %v540 = vpack.c.bf16 %v508, %v508
      %v541 = vpack.c.bf16 %v509, %v509
      %v542 = vpack.c.bf16 %v510, %v510
      %v543 = vpack.c.bf16 %v511, %v511
      %v544 = vpack.c.bf16 %v512, %v512
      %v545 = vpack.c.bf16 %v513, %v513
      %v546 = vpack.c.bf16 %v514, %v514
      %vm547 = vcmask 257024
      %548 = vst.msk [vmem:[%s172] sm:$0xf] %vm547, %v515
      %549 = vst.msk [vmem:[%s172 + $0x4] sm:$0xf] %vm547, %v516
      %550 = vst.msk [vmem:[%s172 + $0x8] sm:$0xf] %vm547, %v517
      %551 = vst.msk [vmem:[%s172 + $0xc] sm:$0xf] %vm547, %v518
      %552 = vst.msk [vmem:[%s172 + $0x10] sm:$0xf] %vm547, %v519
      %553 = vst.msk [vmem:[%s172 + $0x14] sm:$0xf] %vm547, %v520
      %554 = vst.msk [vmem:[%s172 + $0x18] sm:$0xf] %vm547, %v521
      %555 = vst.msk [vmem:[%s172 + $0x1c] sm:$0xf] %vm547, %v522
      %556 = vst.msk [vmem:[%s172 + $0x20] sm:$0xf] %vm547, %v523
      %557 = vst.msk [vmem:[%s172 + $0x24] sm:$0xf] %vm547, %v524
      %558 = vst.msk [vmem:[%s172 + $0x28] sm:$0xf] %vm547, %v525
      %559 = vst.msk [vmem:[%s172 + $0x2c] sm:$0xf] %vm547, %v526
      %560 = vst.msk [vmem:[%s172 + $0x30] sm:$0xf] %vm547, %v527
      %561 = vst.msk [vmem:[%s172 + $0x34] sm:$0xf] %vm547, %v528
      %562 = vst.msk [vmem:[%s172 + $0x38] sm:$0xf] %vm547, %v529
      %563 = vst.msk [vmem:[%s172 + $0x3c] sm:$0xf] %vm547, %v530
      %564 = vst.msk [vmem:[%s172 + $0x40] sm:$0xf] %vm547, %v531
      %565 = vst.msk [vmem:[%s172 + $0x44] sm:$0xf] %vm547, %v532
      %566 = vst.msk [vmem:[%s172 + $0x48] sm:$0xf] %vm547, %v533
      %567 = vst.msk [vmem:[%s172 + $0x4c] sm:$0xf] %vm547, %v534
      %568 = vst.msk [vmem:[%s172 + $0x50] sm:$0xf] %vm547, %v535
      %569 = vst.msk [vmem:[%s172 + $0x54] sm:$0xf] %vm547, %v536
      %570 = vst.msk [vmem:[%s172 + $0x58] sm:$0xf] %vm547, %v537
      %571 = vst.msk [vmem:[%s172 + $0x5c] sm:$0xf] %vm547, %v538
      %572 = vst.msk [vmem:[%s172 + $0x60] sm:$0xf] %vm547, %v539
      %573 = vst.msk [vmem:[%s172 + $0x64] sm:$0xf] %vm547, %v540
      %574 = vst.msk [vmem:[%s172 + $0x68] sm:$0xf] %vm547, %v541
      %575 = vst.msk [vmem:[%s172 + $0x6c] sm:$0xf] %vm547, %v542
      %576 = vst.msk [vmem:[%s172 + $0x70] sm:$0xf] %vm547, %v543
      %577 = vst.msk [vmem:[%s172 + $0x74] sm:$0xf] %vm547, %v544
      %578 = vst.msk [vmem:[%s172 + $0x78] sm:$0xf] %vm547, %v545
      %579 = vst.msk [vmem:[%s172 + $0x7c] sm:$0xf] %vm547, %v546
      %s580 = smul.u32 32, %s14
      %p581 = scmp.lt.s32.totalorder %s580, 63
      %s582 = scalar_select %p581, %s580, 63
      %s583 = smul.addr %s582, 4
      %s584 = scalar_lea.vmem %s3, %s583
      // Predicated region
      $region33: #{tpu_custom_call.1} parent=31 // pred_check
        %p585 = pneg %p100
      $region34: #{tpu_custom_call.1} parent=31 // pred_check_branch
        %587 = sbr.rel (%p585) target = $region36
      $region35: #{tpu_custom_call.1} parent=31 // pred_region
        %s588 = smul.u32 32, %s14
      $region36: #{tpu_custom_call.1} parent=31 // pred_fallthru
        _
    $region32: #{tpu_custom_call.1} parent=5 // pred_fallthru
      _
    %p589 = scmp.le.s32.totalorder 2, %s9
    // Predicated region
    $region37: #{tpu_custom_call.1} parent=5 // pred_check
      %p590 = pneg %p589
    $region38: #{tpu_custom_call.1} parent=5 // pred_check_branch
      %592 = sbr.rel (%p590) target = $region40
    $region39: #{tpu_custom_call.1} parent=5 // pred_region
      %s593 = ssub.s32 %s9, 2
      // Predicated region
      $region41: #{tpu_custom_call.1} parent=39 // pred_check
        %p594 = pneg %p106
      $region42: #{tpu_custom_call.1} parent=39 // pred_check_branch
        %596 = sbr.rel (%p594) target = $region44
      $region43: #{tpu_custom_call.1} parent=39 // pred_region
        %s597 = smul.u32 32, %s15
        %p598 = scmp.lt.s32.totalorder %s597, 63
        %s599 = scalar_select %p598, %s597, 63
        %s600 = smul.addr %s599, 4
        %s601 = scalar_lea.vmem %s3, %s600
      $region44: #{tpu_custom_call.1} parent=39 // pred_fallthru
        _
    $region40: #{tpu_custom_call.1} parent=5 // pred_fallthru
      _
  $region6: #{tpu_custom_call.1} parent=0 // loop_footer
    %s13 = sadd.s32 1, %s9
  $region7: #{tpu_custom_call.1} parent=0 // loop_footer_branch
    %8 = sbr.rel target = $region3
  $region8: #{tpu_custom_call.1} parent=0 // loop_exit
    _

</llo_original>
